<compile_context>
chip_gen: v6e
topology: v6e:2x2x1
jax: 0.10.0
libtpu: 0.0.40
codegen_flags: <defaults>
</compile_context>

<pallas_src>
import jax
import jax.numpy as jnp
from jax.experimental import pallas as pl
from jax.experimental.pallas import tpu as pltpu


def attention_kernel(x_ref, w1_ref, b1_ref, w2_ref, b2_ref, ctx_ref, attn_ref):
    Bb, T, H = x_ref.shape
    Hh = w1_ref.shape[1]

    x_raw = x_ref[...]                               # (Bb, T, H) f32 or bf16
    x_f32 = x_raw.astype(jnp.float32)                # f32 for the weighted sum

    # --- Linear(H -> H//2) + Tanh: one flattened MXU matmul, M = Bb*T ---
    x2 = x_raw.reshape(Bb * T, H)
    h = jnp.tanh(
        jnp.dot(x2, w1_ref[...], preferred_element_type=jnp.float32)
        + b1_ref[...]                                # (1, Hh) broadcast
    )                                                # (Bb*T, Hh) f32

    # --- Linear(H//2 -> 1): VPU multiply + lane reduction (no width-1 matmul) ---
    h3 = h.reshape(Bb, T, Hh)
    scores = jnp.sum(h3 * w2_ref[...], axis=-1) + b2_ref[...]   # (Bb, T)

    # --- softmax over the sequence axis (T = lane axis) ---
    m = jnp.max(scores, axis=-1, keepdims=True)      # (Bb, 1)
    e = jnp.exp(scores - m)                          # (Bb, T)
    denom = jnp.sum(e, axis=-1, keepdims=True)       # (Bb, 1)
    attn = e * pl.reciprocal(denom, approx=True)     # (Bb, T), EUP reciprocal

    # --- context = sum_T attn * x (VPU mul + sublane reduction) ---
    ctx = jnp.sum(attn[:, :, None] * x_f32, axis=1)  # (Bb, H)

    ctx_ref[...] = ctx
    attn_ref[...] = attn


def _pick_batch_block(B, T, H, *, target_rows=256, x_block_budget_bytes=8 << 20):
    """Largest Bb that divides B, keeps the double-buffered x block within a
    conservative VMEM budget (v7x: 64 MiB physical), and is either a multiple
    of 8 (sublane-dense (Bb, H)/(Bb, T) output blocks) or the whole batch."""
    max_by_vmem = max(1, x_block_budget_bytes // (2 * T * H * 4))
    want = max(1, min(B, -(-target_rows // T), max_by_vmem))
    for bb in range(want, 0, -1):
        if B % bb == 0 and (bb % 8 == 0 or bb == B):
            return bb
    return B


def attention_layer(x, w1, b1, w2, b2, *, mxu_bf16=False):
    """x: (B, T, H) f32. Returns (context (B, H), attention_weights (B, T, 1)).

    w1: (H, H//2), b1: (1, H//2), w2: (H//2, 1), b2: (1, 1), i.e. the
    right-multiply (transposed nn.Linear) layout: scores = tanh(x@w1+b1)@w2+b2.
    Set mxu_bf16=True on v6e/v7x to feed the first matmul in bf16 (f32 accum);
    expect ~1e-3-level deltas vs. the f32 reference.
    """
    B, T, H = x.shape
    Hh = w1.shape[1]
    Bb = _pick_batch_block(B, T, H)
    grid = B // Bb

    # Second Linear runs as mul+reduce, so pass w2 as a lane-dense (1, Hh) row.
    w2_row = jnp.reshape(w2, (1, Hh)).astype(jnp.float32)
    b1 = b1.astype(jnp.float32)
    b2 = b2.astype(jnp.float32)

    if mxu_bf16:  # v6e/v7x: bf16 MXU operands; elementwise math stays f32.
        x_in, w1_in = x.astype(jnp.bfloat16), w1.astype(jnp.bfloat16)
    else:
        x_in, w1_in = x, w1

    ctx_shape = jax.ShapeDtypeStruct((B, H), jnp.float32)
    attn_shape = jax.ShapeDtypeStruct((B, T), jnp.float32)  # lane-dense; (B,T,1) in wrapper

    ctx, attn2d = pl.pallas_call(
        attention_kernel,
        out_shape=(ctx_shape, attn_shape),
        grid_spec=pltpu.PrefetchScalarGridSpec(
            num_scalar_prefetch=0,
            grid=(grid,),
            in_specs=[
                pl.BlockSpec((Bb, T, H), lambda b: (b, 0, 0)),   # x: Bb batch rows
                # Constant index_map => weights/biases DMA'd once, not per step.
                pl.BlockSpec((H, Hh), lambda b: (0, 0)),         # W1
                pl.BlockSpec((1, Hh), lambda b: (0, 0)),         # b1
                pl.BlockSpec((1, Hh), lambda b: (0, 0)),         # W2 (as a row)
                pl.BlockSpec((1, 1), lambda b: (0, 0)),          # b2
            ],
            out_specs=[
                pl.BlockSpec((Bb, H), lambda b: (b, 0)),         # context slab
                pl.BlockSpec((Bb, T), lambda b: (b, 0)),         # attn (lane-dense)
            ],
        ),
        compiler_params=pltpu.CompilerParams(
            dimension_semantics=("parallel",),   # megacore / v7x 2-TC sharding
        ),
    )(x_in, w1_in, b1, w2_row, b2)

    return ctx, attn2d[:, :, None]


def reference(x, w1, b1, w2, b2):
    scores = jnp.tanh(x @ w1 + b1) @ w2 + b2            # (B, T, 1)
    attn = jax.nn.softmax(scores, axis=1)               # softmax over T
    ctx = jnp.sum(attn * x, axis=1)                     # (B, H)
    return ctx, attn


if __name__ == "__main__":
    B, T, H = 2, 8, 32
    Hh = H // 2

    key = jax.random.PRNGKey(0)
    kx, kw1, kb1, kw2, kb2 = jax.random.split(key, 5)

    x = jax.random.normal(kx, (B, T, H), dtype=jnp.float32)
    # Deterministic synthetic parameters (shapes from nn.Linear in __init__).
    w1 = jax.random.normal(kw1, (H, Hh), dtype=jnp.float32) * 0.1
    b1 = jax.random.normal(kb1, (1, Hh), dtype=jnp.float32) * 0.1
    w2 = jax.random.normal(kw2, (Hh, 1), dtype=jnp.float32) * 0.1
    b2 = jax.random.normal(kb2, (1, 1), dtype=jnp.float32) * 0.1

    ctx, attn = attention_layer(x, w1, b1, w2, b2)
    jax.block_until_ready((ctx, attn))

    ctx_ref, attn_ref = reference(x, w1, b1, w2, b2)
    assert ctx.shape == (B, H) and attn.shape == (B, T, 1)
    # Tolerance loosened vs. 1e-5 because the softmax divide uses the EUP
    # approximate reciprocal; the f32 MXU path is otherwise exact.
    assert jnp.allclose(ctx, ctx_ref, atol=2e-3, rtol=2e-3)
    assert jnp.allclose(attn, attn_ref, atol=2e-3, rtol=2e-3)

    print("KERNEL_OK")
</pallas_src>

<mosaic_0001>
module attributes {stable_mosaic.version = 11 : i64} {
  func.func @attention_kernel(%arg0: i32, %arg1: memref<2x8x32xf32, #tpu.memory_space<vmem>>, %arg2: memref<32x16xf32, #tpu.memory_space<vmem>>, %arg3: memref<1x16xf32, #tpu.memory_space<vmem>>, %arg4: memref<1x16xf32, #tpu.memory_space<vmem>>, %arg5: memref<1x1xf32, #tpu.memory_space<vmem>>, %arg6: memref<2x32xf32, #tpu.memory_space<vmem>>, %arg7: memref<2x8xf32, #tpu.memory_space<vmem>>) attributes {dimension_semantics = [#tpu.dimension_semantics<parallel>], iteration_bounds = array<i64: 1>, scalar_prefetch = 0 : i64, scratch_operands = 0 : i64, tpu.core_type = #tpu.core_type<tc>, window_params = [{transform_indices = @transform_0, window_bounds = array<i64: 2, 8, 32>}, {pipeline_mode = #tpu.pipeline_mode<synchronous>, transform_indices = @transform_1, window_bounds = array<i64: 32, 16>}, {pipeline_mode = #tpu.pipeline_mode<synchronous>, transform_indices = @transform_2, window_bounds = array<i64: 1, 16>}, {pipeline_mode = #tpu.pipeline_mode<synchronous>, transform_indices = @transform_3, window_bounds = array<i64: 1, 16>}, {pipeline_mode = #tpu.pipeline_mode<synchronous>, transform_indices = @transform_4, window_bounds = array<i64: 1, 1>}, {transform_indices = @transform_5, window_bounds = array<i64: 2, 32>}, {transform_indices = @transform_6, window_bounds = array<i64: 2, 8>}]} {
    %c0 = arith.constant 0 : index
    %c0_0 = arith.constant 0 : index
    %c0_1 = arith.constant 0 : index
    %0 = vector.load %arg1[%c0, %c0_0, %c0_1] : memref<2x8x32xf32, #tpu.memory_space<vmem>>, vector<2x8x32xf32>
    %1 = vector.shape_cast %0 : vector<2x8x32xf32> to vector<16x32xf32>
    %c0_2 = arith.constant 0 : index
    %c0_3 = arith.constant 0 : index
    %2 = vector.load %arg2[%c0_2, %c0_3] : memref<32x16xf32, #tpu.memory_space<vmem>>, vector<32x16xf32>
    %cst = arith.constant dense<0.000000e+00> : vector<16x16xf32>
    %3 = tpu.matmul %1, %2, %cst {dimension_numbers = #tpu.dot_dimension_numbers<[1], [0], [0], [1], [0, 0, 1, 1], [], []>} : vector<16x32xf32>, vector<32x16xf32>, vector<16x16xf32> -> vector<16x16xf32>
    %c0_4 = arith.constant 0 : index
    %c0_5 = arith.constant 0 : index
    %4 = vector.load %arg3[%c0_4, %c0_5] : memref<1x16xf32, #tpu.memory_space<vmem>>, vector<1x16xf32>
    %5 = vector.broadcast %4 : vector<1x16xf32> to vector<16x16xf32>
    %6 = arith.addf %3, %5 : vector<16x16xf32>
    %7 = math.tanh %6 : vector<16x16xf32>
    %8 = vector.shape_cast %7 : vector<16x16xf32> to vector<2x8x16xf32>
    %c0_6 = arith.constant 0 : index
    %c0_7 = arith.constant 0 : index
    %9 = vector.load %arg4[%c0_6, %c0_7] : memref<1x16xf32, #tpu.memory_space<vmem>>, vector<1x16xf32>
    %10 = vector.shape_cast %9 : vector<1x16xf32> to vector<1x1x16xf32>
    %11 = vector.broadcast %10 : vector<1x1x16xf32> to vector<2x8x16xf32>
    %12 = arith.mulf %8, %11 : vector<2x8x16xf32>
    %cst_8 = arith.constant dense<0.000000e+00> : vector<2x8xf32>
    %13 = vector.multi_reduction <add>, %12, %cst_8 [2] : vector<2x8x16xf32> to vector<2x8xf32>
    %c0_9 = arith.constant 0 : index
    %c0_10 = arith.constant 0 : index
    %14 = vector.load %arg5[%c0_9, %c0_10] : memref<1x1xf32, #tpu.memory_space<vmem>>, vector<1x1xf32>
    %15 = vector.broadcast %14 : vector<1x1xf32> to vector<2x8xf32>
    %16 = arith.addf %13, %15 : vector<2x8xf32>
    %cst_11 = arith.constant dense<0xFF800000> : vector<2xf32>
    %17 = vector.multi_reduction <maximumf>, %16, %cst_11 [1] : vector<2x8xf32> to vector<2xf32>
    %18 = vector.shape_cast %17 : vector<2xf32> to vector<2x1xf32>
    %19 = vector.broadcast %18 : vector<2x1xf32> to vector<2x8xf32>
    %20 = arith.subf %16, %19 : vector<2x8xf32>
    %21 = math.exp %20 : vector<2x8xf32>
    %cst_12 = arith.constant dense<0.000000e+00> : vector<2xf32>
    %22 = vector.multi_reduction <add>, %21, %cst_12 [1] : vector<2x8xf32> to vector<2xf32>
    %23 = vector.shape_cast %22 : vector<2xf32> to vector<2x1xf32>
    %24 = tpu.reciprocal %23 {approx = true} : vector<2x1xf32> -> vector<2x1xf32>
    %25 = vector.broadcast %24 : vector<2x1xf32> to vector<2x8xf32>
    %26 = arith.mulf %21, %25 : vector<2x8xf32>
    %27 = vector.shape_cast %26 : vector<2x8xf32> to vector<2x8x1xf32>
    %28 = vector.broadcast %27 : vector<2x8x1xf32> to vector<2x8x32xf32>
    %29 = arith.mulf %28, %0 : vector<2x8x32xf32>
    %cst_13 = arith.constant dense<0.000000e+00> : vector<2x32xf32>
    %30 = vector.multi_reduction <add>, %29, %cst_13 [1] : vector<2x8x32xf32> to vector<2x32xf32>
    %c0_14 = arith.constant 0 : index
    %c0_15 = arith.constant 0 : index
    %31 = vector.load %arg6[%c0_14, %c0_15] : memref<2x32xf32, #tpu.memory_space<vmem>>, vector<2x32xf32>
    tpu.vector_store %arg6[%c0_14, %c0_15], %30 {strides = array<i32>} : memref<2x32xf32, #tpu.memory_space<vmem>>, vector<2x32xf32>,
    %c0_16 = arith.constant 0 : index
    %c0_17 = arith.constant 0 : index
    %32 = vector.load %arg7[%c0_16, %c0_17] : memref<2x8xf32, #tpu.memory_space<vmem>>, vector<2x8xf32>
    tpu.vector_store %arg7[%c0_16, %c0_17], %26 {strides = array<i32>} : memref<2x8xf32, #tpu.memory_space<vmem>>, vector<2x8xf32>,
    return
  }
  func.func @transform_0(%arg0: i32) -> (i32, i32, i32) {
    %c0_i32 = arith.constant 0 : i32
    %c0_i32_0 = arith.constant 0 : i32
    %c0_i32_1 = arith.constant 0 : i32
    return %arg0, %c0_i32, %c0_i32_0 : i32, i32, i32
  }
  func.func @transform_1(%arg0: i32) -> (i32, i32) {
    %c0_i32 = arith.constant 0 : i32
    %c0_i32_0 = arith.constant 0 : i32
    %c0_i32_1 = arith.constant 0 : i32
    return %c0_i32, %c0_i32_0 : i32, i32
  }
  func.func @transform_2(%arg0: i32) -> (i32, i32) {
    %c0_i32 = arith.constant 0 : i32
    %c0_i32_0 = arith.constant 0 : i32
    %c0_i32_1 = arith.constant 0 : i32
    return %c0_i32, %c0_i32_0 : i32, i32
  }
  func.func @transform_3(%arg0: i32) -> (i32, i32) {
    %c0_i32 = arith.constant 0 : i32
    %c0_i32_0 = arith.constant 0 : i32
    %c0_i32_1 = arith.constant 0 : i32
    return %c0_i32, %c0_i32_0 : i32, i32
  }
  func.func @transform_4(%arg0: i32) -> (i32, i32) {
    %c0_i32 = arith.constant 0 : i32
    %c0_i32_0 = arith.constant 0 : i32
    %c0_i32_1 = arith.constant 0 : i32
    return %c0_i32, %c0_i32_0 : i32, i32
  }
  func.func @transform_5(%arg0: i32) -> (i32, i32) {
    %c0_i32 = arith.constant 0 : i32
    %c0_i32_0 = arith.constant 0 : i32
    return %arg0, %c0_i32 : i32, i32
  }
  func.func @transform_6(%arg0: i32) -> (i32, i32) {
    %c0_i32 = arith.constant 0 : i32
    %c0_i32_0 = arith.constant 0 : i32
    return %arg0, %c0_i32 : i32, i32
  }
}

</mosaic_0001>

<llo_original>
// kernel: tpu_custom_call.1
$region0: #{tpu_custom_call.1}
  #allocation0 [shape = 'u32[]', space=smem, size = 0x4, offset = 0x4, fixed_abs, tag = 'smem constant byte address 0x4 - core index']
  #allocation1 [shape = 'u32[144,128]{1,0:T(1,128)}', space=vmem, size = 0x12000, scoped, tag = 'internal scratch']
  #allocation2 [shape = 'f32[1,1]{1,0:T(1,128)S(1)}', space=vmem, size = 0x200, scoped, tag = 'scoped memory for tpu_custom_call.1']
  %s0 = inlined_call_operand.vmem [shape: f32[2,8,32], index: 0, kind: input, shape index: {}]
  %s1 = inlined_call_operand.vmem [shape: f32[32,16], index: 1, kind: input, shape index: {}]
  %s2 = inlined_call_operand.vmem [shape: f32[1,16], index: 2, kind: input, shape index: {}]
  %s3 = inlined_call_operand.vmem [shape: f32[1,16], index: 3, kind: input, shape index: {}]
  %s4 = inlined_call_operand.<no memory space> [shape: f32[1,1], index: 4, kind: input, shape index: {}]
  %s5 = inlined_call_operand.hbm [shape: f32[2,32], index: 5, kind: output, shape index: {0}]
  %s6 = inlined_call_operand.hbm [shape: f32[2,8], index: 6, kind: output, shape index: {1}]
  %7 = xla_tuple %s5, %s6
  %s8 = sld [smem:[#allocation0]]
  $region38: #{tpu_custom_call.1} parent=0
    _
  %s10 = ssub.s32 1, %s8
  %s11 = scalar_select 0, %s10, %s8
  %v12 = vstv %s4
  %13 = vst [vmem:[#allocation2] sm:$0x1] %v12
  $region1: #{tpu_custom_call.1} parent=0
    #allocation3 [shape = 'u8[1024]{0}', space=vmem, size = 0x400, scoped, tag = 'output window, operand 0, single buffered']
    #allocation4 [shape = 's32[1]{0}', space=sflag, size = 0x4, scoped, tag = 'scoped memory for tpu_custom_call.1']
    #allocation5 [shape = 'u8[1024]{0}', space=vmem, size = 0x400, scoped, tag = 'output window, operand 1, single buffered']
    #allocation6 [shape = 's32[1]{0}', space=sflag, size = 0x4, scoped, tag = 'scoped memory for tpu_custom_call.1']
    %14 = vsyncpa [#allocation4], 0
    %15 = vsyncpa [#allocation6], 0
    // Predicated region
    $region2: #{tpu_custom_call.1} parent=1 // pred_check
      _
    $region3: #{tpu_custom_call.1} parent=1 // pred_check_branch
      %17 = sbr.rel (0) target = $region5
    $region4: #{tpu_custom_call.1} parent=1 // pred_region
      _
    $region5: #{tpu_custom_call.1} parent=1 // pred_fallthru
      _
    // Predicated region
    $region6: #{tpu_custom_call.1} parent=1 // pred_check
      _
    $region7: #{tpu_custom_call.1} parent=1 // pred_check_branch
      %19 = sbr.rel (0) target = $region9
    $region8: #{tpu_custom_call.1} parent=1 // pred_region
      _
    $region9: #{tpu_custom_call.1} parent=1 // pred_fallthru
      _
    // Predicated region
    $region10: #{tpu_custom_call.1} parent=1 // pred_check
      _
    $region11: #{tpu_custom_call.1} parent=1 // pred_check_branch
      %21 = sbr.rel (0) target = $region13
    $region12: #{tpu_custom_call.1} parent=1 // pred_region
      _
    $region13: #{tpu_custom_call.1} parent=1 // pred_fallthru
      _
    // Predicated region
    $region14: #{tpu_custom_call.1} parent=1 // pred_check
      _
    $region15: #{tpu_custom_call.1} parent=1 // pred_check_branch
      %23 = sbr.rel (0) target = $region17
    $region16: #{tpu_custom_call.1} parent=1 // pred_region
      _
    $region17: #{tpu_custom_call.1} parent=1 // pred_fallthru
      _
    // Predicated region
    $region18: #{tpu_custom_call.1} parent=1 // pred_check
      _
    $region19: #{tpu_custom_call.1} parent=1 // pred_check_branch
      %25 = sbr.rel (0) target = $region21
    $region20: #{tpu_custom_call.1} parent=1 // pred_region
      _
    $region21: #{tpu_custom_call.1} parent=1 // pred_fallthru
      _
    %v26 = vld [vmem:[%s0] sm:$0xff]
    %v27 = vld [vmem:[%s0 + $0x8] sm:$0xff]
    %v28 = vld [vmem:[%s1] sm:$0xff]
    %v29 = vld [vmem:[%s1 + $0x8] sm:$0xff]
    %v30 = vld [vmem:[%s1 + $0x10] sm:$0xff]
    %v31 = vld [vmem:[%s1 + $0x18] sm:$0xff]
    %v32 = vld [vmem:[%s2] sm:$0x1]
    %v34 = vlaneseq
    %v35 = vshrl.u32 %v34, 7
    %v36 = vsub.s32 0, %v35
    %v37 = vrot.slane %v32, %v36
    %vm39 = vcmask 261120
    %v41 = vsel %vm39, %v26, 0
    %v44 = vsel %vm39, %v27, 0
    %46 = vmatprep.subr.mxu0 0.0
    %47 = vmatpush1.msra.mxu0 0.0
    %48 = vmatprep.subr.mxu0 0.0
    %49 = vmatpush1.msra.mxu0 0.0
    %50 = vmatprep.subr.mxu0 0.0
    %51 = vmatpush1.msra.mxu0 0.0
    %52 = vmatprep.subr.mxu0 0.0
    %53 = vmatpush1.msra.mxu0 0.0
    %54 = vmatprep.subr.mxu0 0.0
    %55 = vmatpush1.msra.mxu0 0.0
    %56 = vmatprep.subr.mxu0 0.0
    %57 = vmatpush1.msra.mxu0 0.0
    %58 = vmatprep.subr.mxu0 0.0
    %59 = vmatpush1.msra.mxu0 0.0
    %60 = vmatprep.subr.mxu0 0.0
    %61 = vmatpush1.msra.mxu0 0.0
    %62 = vmatprep.subr.mxu0 0.0
    %63 = vmatpush1.msra.mxu0 0.0
    %64 = vmatprep.subr.mxu0 0.0
    %65 = vmatpush1.msra.mxu0 0.0
    %66 = vmatprep.subr.mxu0 0.0
    %67 = vmatpush1.msra.mxu0 0.0
    %68 = vmatprep.subr.mxu0 0.0
    %69 = vmatpush1.msra.mxu0 0.0
    %70 = vmatprep.subr.mxu0 0.0
    %71 = vmatpush1.msra.mxu0 %v31
    %72 = vmatprep.subr.mxu0 0.0
    %73 = vmatpush1.msra.mxu0 %v30
    %74 = vmatprep.subr.mxu0 0.0
    %75 = vmatpush1.msra.mxu0 %v29
    %76 = vmatprep.subr.mxu0 0.0
    %77 = vmatpush1.msra.mxu0 %v28
    %78 = vmatprep.subr.mxu0 0.0
    %79 = vmatpush2.msra.mxu0 0.0
    %80 = vmatprep.subr.mxu0 0.0
    %81 = vmatpush2.msra.mxu0 0.0
    %82 = vmatprep.subr.mxu0 0.0
    %83 = vmatpush2.msra.mxu0 0.0
    %84 = vmatprep.subr.mxu0 0.0
    %85 = vmatpush2.msra.mxu0 0.0
    %86 = vmatprep.subr.mxu0 0.0
    %87 = vmatpush2.msra.mxu0 0.0
    %88 = vmatprep.subr.mxu0 0.0
    %89 = vmatpush2.msra.mxu0 0.0
    %90 = vmatprep.subr.mxu0 0.0
    %91 = vmatpush2.msra.mxu0 0.0
    %92 = vmatprep.subr.mxu0 0.0
    %93 = vmatpush2.msra.mxu0 0.0
    %94 = vmatprep.subr.mxu0 0.0
    %95 = vmatpush2.msra.mxu0 0.0
    %96 = vmatprep.subr.mxu0 0.0
    %97 = vmatpush2.msra.mxu0 0.0
    %98 = vmatprep.subr.mxu0 0.0
    %99 = vmatpush2.msra.mxu0 0.0
    %100 = vmatprep.subr.mxu0 0.0
    %101 = vmatpush2.msra.mxu0 0.0
    %102 = vmatprep.subr.mxu0 0.0
    %103 = vmatpush2.msra.mxu0 0.0
    %104 = vmatprep.subr.mxu0 0.0
    %105 = vmatpush2.msra.mxu0 0.0
    %106 = vmatprep.subr.mxu0 0.0
    %107 = vmatpush2.msra.mxu0 0.0
    %108 = vmatprep.subr.mxu0 0.0
    %109 = vmatpush2.msra.mxu0 0.0
    %110 = vmatprep.mubr.f32.mxu0 0.0
    %111 = vmatmul.mubr.f32.gmra.mxu0 %v41
    %v112 = vpop.f32.mrf.mxu0
    %v113 = vadd.f32 %v37, %v112
    %v114 = vpop.f32.mrf.mxu0
    %115 = vmatprep.mubr.f32.mxu0 0.0
    %116 = vmatmul.mubr.f32.gmra.mxu0 %v44
    %v117 = vpop.f32.mrf.mxu0
    %v118 = vadd.f32 %v37, %v117
    %v119 = vpop.f32.mrf.mxu0
    %120 = vdwg.mxu0
    %v121 = vtanh.pop %v113
    %v122 = vtanh.pop %v118
    %v123 = vld [vmem:[%s3] sm:$0x1]
    %v125 = vlaneseq
    %v126 = vshrl.u32 %v125, 7
    %v127 = vsub.s32 0, %v126
    %v128 = vrot.slane %v123, %v127
    %v130 = vmul.f32 %v121, %v128
    %v131 = vmul.f32 %v122, %v128
    %vm132 = vcmask 130048
    %v133 = vsel %vm132, %v130, 0.0
    %134 = vadd.xlane.f32.xlu0 %v133
    %v135 = vpop.xlane.xlu0 %134
    %v136 = vsel %vm132, %v131, 0.0
    %137 = vadd.xlane.f32.xlu0 %v136
    %v138 = vpop.xlane.xlu0 %137
    %v139 = vld [vmem:[#allocation2] sm:$0x1]
    %v141 = vlaneseq
    %v142 = vshrl.u32 %v141, 7
    %v143 = vsub.s32 0, %v142
    %v144 = vrot.slane %v139, %v143
    %145 = vset.pattern.permute.xlu0 0
    %146 = vperm.xlu0 %145, %v144
    %v147 = vpop.permute.xlu0 %146
    %v149 = vadd.f32 %v135, %v147
    %v150 = vadd.f32 %v138, %v147
    %v153 = vlaneseq
    %v154 = vand.u32 %v153, 127
    %v155 = vlaneseq
    %v156 = vshrl.u32 %v155, 7
    %v157 = vsub.s32 %v154, %v156
    %v158 = vrot.slane %v149, %v157
    %v159 = vlaneseq
    %v160 = vshrl.u32 %v159, 7
    %v161 = vsub.s32 %v154, %v160
    %v162 = vrot.slane %v150, %v161
    %vm163 = vcmask 1041409
    %v164 = vsel %vm163, %v162, %v158
    %vm166 = vcmask 58368
    %v167 = vsel %vm166, %v164, -inf
    %168 = vmax.xlane.f32.xlu0 %v167
    %v169 = vpop.xlane.xlu0 %168
    %v171 = vlaneseq
    %v172 = vshrl.u32 %v171, 7
    %v173 = vsub.s32 0, %v172
    %v174 = vrot.slane %v169, %v173
    %v175 = vlaneseq
    %v176 = vshrl.u32 %v175, 7
    %v177 = vsub.s32 1, %v176
    %v178 = vrot.slane %v169, %v177
    %v181 = vsub.f32 %v149, %v174
    %v182 = vsub.f32 %v150, %v178
    %v183 = vmul.f32 %v181, 1.442695
    %v184 = vpow.pop %v183
    %v185 = vmul.f32 %v182, 1.442695
    %v186 = vpow.pop %v185
    %189 = vset.pattern.permute.xlu0 0
    %190 = vperm.xlu0 %189, %v184
    %v191 = vpop.permute.xlu0 %190
    %192 = vset.pattern.permute.xlu0 0
    %193 = vperm.xlu0 %192, %v186
    %v194 = vpop.permute.xlu0 %193
    %v195 = vlaneseq
    %v196 = vshrl.u32 %v195, 7
    %v197 = vsub.s32 %v154, %v196
    %v198 = vrot.slane %v191, %v197
    %v199 = vlaneseq
    %v200 = vshrl.u32 %v199, 7
    %v201 = vsub.s32 %v154, %v200
    %v202 = vrot.slane %v194, %v201
    %v203 = vsel %vm163, %v202, %v198
    %v205 = vsel %vm166, %v203, 0.0
    %206 = vadd.xlane.f32.xlu0 %v205
    %v207 = vpop.xlane.xlu0 %206
    %v208 = vrcp.pop %v207
    %v210 = vlaneseq
    %v211 = vshrl.u32 %v210, 7
    %v212 = vsub.s32 0, %v211
    %v213 = vrot.slane %v208, %v212
    %v214 = vlaneseq
    %v215 = vshrl.u32 %v214, 7
    %v216 = vsub.s32 1, %v215
    %v217 = vrot.slane %v208, %v216
    %v220 = vmul.f32 %v184, %v213
    %v221 = vmul.f32 %v186, %v217
    %223 = vset.pattern.permute.xlu0 0
    %224 = vperm.xlu0 %223, %v220
    %v225 = vpop.permute.xlu0 %224
    %228 = vset.pattern.permute.xlu0 0
    %229 = vperm.xlu0 %228, %v221
    %v230 = vpop.permute.xlu0 %229
    %v232 = vmul.f32 %v225, %v26
    %v233 = vmul.f32 %v230, %v27
    %v234 = vsel %vm39, %v232, 0.0
    %v235 = vrot.slane %v234, 4
    %v236 = vadd.f32 %v234, %v235
    %v237 = vrot.slane %v236, 2
    %v238 = vadd.f32 %v236, %v237
    %v239 = vrot.slane %v238, 1
    %v240 = vadd.f32 %v238, %v239
    %v241 = vsel %vm39, %v233, 0.0
    %v242 = vrot.slane %v241, 4
    %v243 = vadd.f32 %v241, %v242
    %v244 = vrot.slane %v243, 2
    %v245 = vadd.f32 %v243, %v244
    %v246 = vrot.slane %v245, 1
    %v247 = vadd.f32 %v245, %v246
    %v250 = vsel %vm163, %v247, %v240
    %vm252 = vcmask 254976
    %253 = vst.msk [vmem:[#allocation3] sm:$0x3] %vm252, %v250
    %v254 = vlaneseq
    %v255 = vshrl.u32 %v254, 7
    %v256 = vsub.s32 %v154, %v255
    %v257 = vrot.slane %v225, %v256
    %v258 = vlaneseq
    %v259 = vshrl.u32 %v258, 7
    %v260 = vsub.s32 %v154, %v259
    %v261 = vrot.slane %v230, %v260
    %v262 = vsel %vm163, %v261, %v257
    %264 = vst.msk [vmem:[#allocation5] sm:$0x3] %vm166, %v262
    // Predicated region
    $region22: #{tpu_custom_call.1} parent=1 // pred_check
      _
    $region23: #{tpu_custom_call.1} parent=1 // pred_check_branch
      %266 = sbr.rel (0) target = $region25
    $region24: #{tpu_custom_call.1} parent=1 // pred_region
      %s268 = ssub.s32 32, 32
      %269 = vsyncadd [#allocation4], %s268
      %s271 = sshll.u32 [#allocation3], 4
      %s272 = int_to_ptr.vmem [resolvable:$true] %s271
      %274 = dma.vmem_to_hbm [thread:$0]  %s272, 32, %s5, [#allocation4]
    $region25: #{tpu_custom_call.1} parent=1 // pred_fallthru
      _
    // Predicated region
    $region26: #{tpu_custom_call.1} parent=1 // pred_check
      _
    $region27: #{tpu_custom_call.1} parent=1 // pred_check_branch
      %276 = sbr.rel (0) target = $region29
    $region28: #{tpu_custom_call.1} parent=1 // pred_region
      %s278 = ssub.s32 32, 32
      %279 = vsyncadd [#allocation6], %s278
      %s281 = sshll.u32 [#allocation5], 4
      %s282 = int_to_ptr.vmem [resolvable:$true] %s281
      %284 = dma.vmem_to_hbm [thread:$0]  %s282, 32, %s6, [#allocation6]
    $region29: #{tpu_custom_call.1} parent=1 // pred_fallthru
      _
    // Predicated region
    $region30: #{tpu_custom_call.1} parent=1 // pred_check
      _
    $region31: #{tpu_custom_call.1} parent=1 // pred_check_branch
      %286 = sbr.rel (0) target = $region33
    $region32: #{tpu_custom_call.1} parent=1 // pred_region
      %287 = dma.done [#allocation4], 32
    $region33: #{tpu_custom_call.1} parent=1 // pred_fallthru
      _
    // Predicated region
    $region34: #{tpu_custom_call.1} parent=1 // pred_check
      _
    $region35: #{tpu_custom_call.1} parent=1 // pred_check_branch
      %289 = sbr.rel (0) target = $region37
    $region36: #{tpu_custom_call.1} parent=1 // pred_region
      %290 = dma.done [#allocation6], 32
    $region37: #{tpu_custom_call.1} parent=1 // pred_fallthru
      _
    %291 = vsyncpa [#allocation4], 1
    %292 = vsyncpa [#allocation6], 1

</llo_original>
